<compile_context>
chip_gen: v5e
topology: v5e:2x2
jax: 0.10.0
libtpu: 0.0.40
codegen_flags: <defaults>
</compile_context>

<pallas_src>
import functools

import jax
import jax.numpy as jnp
from jax.experimental import pallas as pl
from jax.experimental.pallas import tpu as pltpu

LANE = 128     # TPU lane width: last dims padded to multiples of 128 for lane-dense stores
SUBLANE = 8    # f32 sublane count: batch tile is a multiple of 8


def _round_up(x, m):
    return (x + m - 1) // m * m


def _mlp_kernel(x_ref, w1_ref, b1_ref, w2_ref, b2_ref, o_ref):
    """One batch tile of:  Y = sigmoid( sigmoid(X @ W1^T + b1) @ W2^T + b2 ).

    x_ref  : (TM, Din_p)    bf16
    w1_ref : (H_p, Din_p)   bf16   (PyTorch (out, in) layout; contracted on last dim)
    b1_ref : (1,  H_p)      f32
    w2_ref : (Dout_p, H_p)  bf16
    b2_ref : (1,  Dout_p)   f32
    o_ref  : (TM, Dout_p)
    """
    # Hoist bias loads once per kernel body.
    b1 = b1_ref[...]
    b2 = b2_ref[...]

    # Hidden layer: bf16 MXU matmul (NT: contract on the `in` dim), f32 accumulation.
    h = jax.lax.dot_general(
        x_ref[...], w1_ref[...],
        dimension_numbers=(((1,), (1,)), ((), ())),      # X @ W1^T without a transpose
        preferred_element_type=jnp.float32,
    )
    h = jax.nn.sigmoid(h + b1).astype(jnp.bfloat16)      # activation back to bf16 for MXU

    # Output layer.
    y = jax.lax.dot_general(
        h, w2_ref[...],
        dimension_numbers=(((1,), (1,)), ((), ())),      # X2 @ W2^T
        preferred_element_type=jnp.float32,
    )
    o_ref[...] = jax.nn.sigmoid(y + b2).astype(o_ref.dtype)


def prepare_params(w1, b1, w2, b2):
    """One-time parameter prep (call once, NOT per forward):
       - keep PyTorch (out_features, in_features) layout (no transpose materialized),
       - zero-pad every feature dim up to a multiple of 128,
       - cast weights to bf16 for the MXU; biases stay f32.

    Padded hidden units have zero weights/bias, so the sigmoid(0)=0.5 they produce
    never reaches real outputs; padded output columns are sliced off in the wrapper.
    """
    h_dim, d_in = w1.shape
    d_out = w2.shape[0]
    d_in_p = _round_up(d_in, LANE)
    h_p = _round_up(h_dim, LANE)
    d_out_p = _round_up(d_out, LANE)

    w1_p = jnp.zeros((h_p, d_in_p), jnp.bfloat16).at[:h_dim, :d_in].set(w1.astype(jnp.bfloat16))
    b1_p = jnp.zeros((1, h_p), jnp.float32).at[0, :h_dim].set(b1.astype(jnp.float32))
    w2_p = jnp.zeros((d_out_p, h_p), jnp.bfloat16).at[:d_out, :h_dim].set(w2.astype(jnp.bfloat16))
    b2_p = jnp.zeros((1, d_out_p), jnp.float32).at[0, :d_out].set(b2.astype(jnp.float32))
    return (w1_p, b1_p, w2_p, b2_p), (d_in, h_dim, d_out)


def _pick_tile(n, d_in_p, h_p, d_out_p, out_bytes, budget_bytes):
    """Largest power-of-two batch tile whose VMEM footprint fits `budget_bytes`."""
    # Resident weights/biases (count x2 in case the pipeliner double-buffers them).
    resident = 2 * (h_p * d_in_p * 2 + d_out_p * h_p * 2 + h_p * 4 + d_out_p * 4)
    # Per-row bytes: 2x-buffered bf16 x tile + 2x-buffered output tile
    #                + f32 hidden activation + f32 output-stage temp.
    per_row = 2 * d_in_p * 2 + 2 * d_out_p * out_bytes + h_p * 4 + d_out_p * 4
    tm = 1024
    while tm > SUBLANE and resident + tm * per_row > budget_bytes:
        tm //= 2
    tm = max(tm, SUBLANE)
    # Never larger than the (sublane-rounded) batch itself.
    tm = min(tm, _round_up(n, SUBLANE))
    return tm, resident + tm * per_row


def one_hidden_layer_network(x, prepared):
    """Forward pass. `prepared` comes from prepare_params(w1, b1, w2, b2)."""
    (w1_p, b1_p, w2_p, b2_p), (d_in, h_dim, d_out) = prepared
    n = x.shape[0]
    h_p, d_in_p = w1_p.shape
    d_out_p = w2_p.shape[0]

    out_dtype = x.dtype
    out_bytes = jnp.dtype(out_dtype).itemsize

    # Size the batch tile for the smallest-VMEM target (v7x: 64 MiB/TC) with headroom.
    budget = 40 * 1024 * 1024
    tm, vmem_need = _pick_tile(n, d_in_p, h_p, d_out_p, out_bytes, budget)

    n_pad = _round_up(n, tm)
    x_p = jnp.zeros((n_pad, d_in_p), jnp.bfloat16).at[:n, :d_in].set(x.astype(jnp.bfloat16))

    vmem_limit = int(min(max(2 * vmem_need, 32 * 1024 * 1024), 56 * 1024 * 1024))

    y_p = pl.pallas_call(
        _mlp_kernel,
        out_shape=jax.ShapeDtypeStruct((n_pad, d_out_p), out_dtype),
        grid=(n_pad // tm,),
        in_specs=[
            pl.BlockSpec((tm, d_in_p), lambda i: (i, 0)),      # x: tiled over batch rows
            pl.BlockSpec((h_p, d_in_p), lambda i: (0, 0)),     # W1: resident across grid
            pl.BlockSpec((1, h_p), lambda i: (0, 0)),          # b1: resident
            pl.BlockSpec((d_out_p, h_p), lambda i: (0, 0)),    # W2: resident
            pl.BlockSpec((1, d_out_p), lambda i: (0, 0)),      # b2: resident
        ],
        out_specs=pl.BlockSpec((tm, d_out_p), lambda i: (i, 0)),
        compiler_params=pltpu.CompilerParams(
            dimension_semantics=("parallel",),   # independent batch tiles -> megacore shard
            vmem_limit_bytes=vmem_limit,
        ),
    )(x_p, w1_p, b1_p, w2_p, b2_p)

    # Slice away batch / output-column padding.
    return y_p[:n, :d_out]


def _init_linear(key, out_features, in_features):
    """Deterministic init mimicking torch.nn.Linear default (uniform +/- 1/sqrt(fan_in))."""
    kw, kb = jax.random.split(key)
    bound = 1.0 / jnp.sqrt(jnp.float32(in_features))
    w = jax.random.uniform(kw, (out_features, in_features), jnp.float32, -bound, bound)
    b = jax.random.uniform(kb, (out_features,), jnp.float32, -bound, bound)
    return w, b


if __name__ == "__main__":
    # Shapes consistent with the module: Data_input=16, Hidden_layer_input=32, Data_out=8
    N, D_IN, HIDDEN, D_OUT = 8, 16, 32, 8

    key = jax.random.PRNGKey(0)
    kx, k1, k2 = jax.random.split(key, 3)

    x = jax.random.normal(kx, (N, D_IN), jnp.float32)
    w1, b1 = _init_linear(k1, HIDDEN, D_IN)
    w2, b2 = _init_linear(k2, D_OUT, HIDDEN)

    params = prepare_params(w1, b1, w2, b2)          # one-time prep (pad + bf16 cast)
    y = one_hidden_layer_network(x, params)
    y = jax.block_until_ready(y)

    # Reference check in plain JAX (same math as the PyTorch module), f32 throughout.
    ref = jax.nn.sigmoid(jax.nn.sigmoid(x @ w1.T + b1) @ w2.T + b2)
    assert y.shape == (N, D_OUT)
    # bf16 MXU operands with f32 accumulation -> small numeric difference vs f32 ref.
    assert jnp.allclose(y, ref, atol=2e-2, rtol=2e-2), (
        f"max abs err = {float(jnp.max(jnp.abs(y - ref)))}")

    print("KERNEL_OK")
</pallas_src>

<mosaic_0001>
module attributes {stable_mosaic.version = 11 : i64} {
  func.func @_mlp_kernel(%arg0: i32, %arg1: memref<8x128xbf16, #tpu.memory_space<vmem>>, %arg2: memref<128x128xbf16, #tpu.memory_space<vmem>>, %arg3: memref<1x128xf32, #tpu.memory_space<vmem>>, %arg4: memref<128x128xbf16, #tpu.memory_space<vmem>>, %arg5: memref<1x128xf32, #tpu.memory_space<vmem>>, %arg6: memref<8x128xf32, #tpu.memory_space<vmem>>) attributes {dimension_semantics = [#tpu.dimension_semantics<parallel>], iteration_bounds = array<i64: 1>, scalar_prefetch = 0 : i64, scratch_operands = 0 : i64, tpu.core_type = #tpu.core_type<tc>, window_params = [{transform_indices = @transform_0, window_bounds = array<i64: 8, 128>}, {pipeline_mode = #tpu.pipeline_mode<synchronous>, transform_indices = @transform_1, window_bounds = array<i64: 128, 128>}, {pipeline_mode = #tpu.pipeline_mode<synchronous>, transform_indices = @transform_2, window_bounds = array<i64: 1, 128>}, {pipeline_mode = #tpu.pipeline_mode<synchronous>, transform_indices = @transform_3, window_bounds = array<i64: 128, 128>}, {pipeline_mode = #tpu.pipeline_mode<synchronous>, transform_indices = @transform_4, window_bounds = array<i64: 1, 128>}, {transform_indices = @transform_5, window_bounds = array<i64: 8, 128>}]} {
    %c0 = arith.constant 0 : index
    %c0_0 = arith.constant 0 : index
    %0 = vector.load %arg3[%c0, %c0_0] : memref<1x128xf32, #tpu.memory_space<vmem>>, vector<1x128xf32>
    %c0_1 = arith.constant 0 : index
    %c0_2 = arith.constant 0 : index
    %1 = vector.load %arg5[%c0_1, %c0_2] : memref<1x128xf32, #tpu.memory_space<vmem>>, vector<1x128xf32>
    %c0_3 = arith.constant 0 : index
    %c0_4 = arith.constant 0 : index
    %2 = vector.load %arg1[%c0_3, %c0_4] : memref<8x128xbf16, #tpu.memory_space<vmem>>, vector<8x128xbf16>
    %c0_5 = arith.constant 0 : index
    %c0_6 = arith.constant 0 : index
    %3 = vector.load %arg2[%c0_5, %c0_6] : memref<128x128xbf16, #tpu.memory_space<vmem>>, vector<128x128xbf16>
    %cst = arith.constant dense<0.000000e+00> : vector<8x128xf32>
    %4 = tpu.matmul %2, %3, %cst {dimension_numbers = #tpu.dot_dimension_numbers<[1], [1], [0], [0], [0, 0, 1, 0], [], []>} : vector<8x128xbf16>, vector<128x128xbf16>, vector<8x128xf32> -> vector<8x128xf32>
    %5 = vector.broadcast %0 : vector<1x128xf32> to vector<8x128xf32>
    %6 = arith.addf %4, %5 : vector<8x128xf32>
    %7 = arith.negf %6 : vector<8x128xf32>
    %8 = math.exp %7 : vector<8x128xf32>
    %cst_7 = arith.constant 1.000000e+00 : f32
    %9 = vector.broadcast %cst_7 : f32 to vector<8x128xf32>
    %10 = arith.addf %9, %8 : vector<8x128xf32>
    %11 = arith.divf %9, %10 : vector<8x128xf32>
    %12 = arith.truncf %11 : vector<8x128xf32> to vector<8x128xbf16>
    %c0_8 = arith.constant 0 : index
    %c0_9 = arith.constant 0 : index
    %13 = vector.load %arg4[%c0_8, %c0_9] : memref<128x128xbf16, #tpu.memory_space<vmem>>, vector<128x128xbf16>
    %cst_10 = arith.constant dense<0.000000e+00> : vector<8x128xf32>
    %14 = tpu.matmul %12, %13, %cst_10 {dimension_numbers = #tpu.dot_dimension_numbers<[1], [1], [0], [0], [0, 0, 1, 0], [], []>} : vector<8x128xbf16>, vector<128x128xbf16>, vector<8x128xf32> -> vector<8x128xf32>
    %15 = vector.broadcast %1 : vector<1x128xf32> to vector<8x128xf32>
    %16 = arith.addf %14, %15 : vector<8x128xf32>
    %17 = arith.negf %16 : vector<8x128xf32>
    %18 = math.exp %17 : vector<8x128xf32>
    %cst_11 = arith.constant 1.000000e+00 : f32
    %19 = vector.broadcast %cst_11 : f32 to vector<8x128xf32>
    %20 = arith.addf %19, %18 : vector<8x128xf32>
    %21 = arith.divf %19, %20 : vector<8x128xf32>
    %c0_12 = arith.constant 0 : index
    %c0_13 = arith.constant 0 : index
    %22 = vector.load %arg6[%c0_12, %c0_13] : memref<8x128xf32, #tpu.memory_space<vmem>>, vector<8x128xf32>
    tpu.vector_store %arg6[%c0_12, %c0_13], %21 {strides = array<i32>} : memref<8x128xf32, #tpu.memory_space<vmem>>, vector<8x128xf32>,
    return
  }
  func.func @transform_0(%arg0: i32) -> (i32, i32) {
    %c0_i32 = arith.constant 0 : i32
    %c0_i32_0 = arith.constant 0 : i32
    return %arg0, %c0_i32 : i32, i32
  }
  func.func @transform_1(%arg0: i32) -> (i32, i32) {
    %c0_i32 = arith.constant 0 : i32
    %c0_i32_0 = arith.constant 0 : i32
    %c0_i32_1 = arith.constant 0 : i32
    return %c0_i32, %c0_i32_0 : i32, i32
  }
  func.func @transform_2(%arg0: i32) -> (i32, i32) {
    %c0_i32 = arith.constant 0 : i32
    %c0_i32_0 = arith.constant 0 : i32
    %c0_i32_1 = arith.constant 0 : i32
    return %c0_i32, %c0_i32_0 : i32, i32
  }
  func.func @transform_3(%arg0: i32) -> (i32, i32) {
    %c0_i32 = arith.constant 0 : i32
    %c0_i32_0 = arith.constant 0 : i32
    %c0_i32_1 = arith.constant 0 : i32
    return %c0_i32, %c0_i32_0 : i32, i32
  }
  func.func @transform_4(%arg0: i32) -> (i32, i32) {
    %c0_i32 = arith.constant 0 : i32
    %c0_i32_0 = arith.constant 0 : i32
    %c0_i32_1 = arith.constant 0 : i32
    return %c0_i32, %c0_i32_0 : i32, i32
  }
  func.func @transform_5(%arg0: i32) -> (i32, i32) {
    %c0_i32 = arith.constant 0 : i32
    %c0_i32_0 = arith.constant 0 : i32
    return %arg0, %c0_i32 : i32, i32
  }
}

</mosaic_0001>

<llo_original>
// kernel: tpu_custom_call.1
$region0: #{tpu_custom_call.1}
  #allocation0 [shape = 'u32[]', space=smem, size = 0x4, offset = 0x4, fixed_abs, tag = 'smem constant byte address 0x4 - core index']
  #allocation1 [shape = 'u32[72,128]{1,0:T(1,128)}', space=vmem, size = 0x9000, scoped, tag = 'internal scratch']
  %s0 = inlined_call_operand.hbm [shape: bf16[8,128], index: 0, kind: input, shape index: {}]
  %s1 = inlined_call_operand.hbm [shape: bf16[128,128], index: 1, kind: input, shape index: {}]
  %s2 = inlined_call_operand.vmem [shape: f32[1,128], index: 2, kind: input, shape index: {}]
  %s3 = inlined_call_operand.hbm [shape: bf16[128,128], index: 3, kind: input, shape index: {}]
  %s4 = inlined_call_operand.vmem [shape: f32[1,128], index: 4, kind: input, shape index: {}]
  %s5 = inlined_call_operand.hbm [shape: f32[8,128], index: 5, kind: output, shape index: {}]
  %s6 = sld [smem:[#allocation0]]
  $region42: #{tpu_custom_call.1} parent=0
    _
  %s8 = ssub.s32 1, %s6
  %s9 = scalar_select 0, %s8, %s6
  $region1: #{tpu_custom_call.1} parent=0
    #allocation2 [shape = 'u8[2048]{0}', space=vmem, size = 0x800, scoped, tag = 'input window, operand 0, single buffered']
    #allocation3 [shape = 's32[1]{0}', space=sflag, size = 0x4, scoped, tag = 'scoped memory for tpu_custom_call.1']
    #allocation4 [shape = 's32[1]{0}', space=sflag, size = 0x4, scoped, tag = 'scoped memory for tpu_custom_call.1']
    #allocation5 [shape = 'u8[32768]{0}', space=vmem, size = 0x8000, scoped, tag = 'input window, operand 1, single buffered']
    #allocation6 [shape = 's32[1]{0}', space=sflag, size = 0x4, scoped, tag = 'scoped memory for tpu_custom_call.1']
    #allocation7 [shape = 'u8[32768]{0}', space=vmem, size = 0x8000, scoped, tag = 'input window, operand 3, single buffered']
    #allocation8 [shape = 'u8[4096]{0}', space=vmem, size = 0x1000, scoped, tag = 'output window, operand 0, single buffered']
    %10 = vsyncpa [#allocation3], 0
    %11 = vsyncpa [#allocation6], 0
    %12 = vsyncpa [#allocation4], 0
    // Predicated region
    $region2: #{tpu_custom_call.1} parent=1 // pred_check
      _
    $region3: #{tpu_custom_call.1} parent=1 // pred_check_branch
      %14 = sbr.rel (0) target = $region5
    $region4: #{tpu_custom_call.1} parent=1 // pred_region
      %16 = vsyncadd [#allocation3], 0
      %s18 = sshll.u32 %s0, 4
      %s19 = int_to_ptr.hbm [resolvable:$true] %s18
      %s20 = sshll.u32 [#allocation2], 4
      %s21 = int_to_ptr.vmem [resolvable:$true] %s20
      %23 = dma.hbm_to_vmem [thread:$0]  %s19, 64, %s21, [#allocation3]
    $region5: #{tpu_custom_call.1} parent=1 // pred_fallthru
      _
    // Predicated region
    $region6: #{tpu_custom_call.1} parent=1 // pred_check
      _
    $region7: #{tpu_custom_call.1} parent=1 // pred_check_branch
      %25 = sbr.rel (0) target = $region9
    $region8: #{tpu_custom_call.1} parent=1 // pred_region
      %27 = vsyncadd [#allocation6], 0
      %s28 = sshll.u32 %s1, 4
      %s29 = int_to_ptr.hbm [resolvable:$true] %s28
      %s30 = sshll.u32 [#allocation5], 4
      %s31 = int_to_ptr.vmem [resolvable:$true] %s30
      %36 = dma.hbm_to_vmem [thread:$0]  %s29, 1024, %s31, [#allocation6], 64, 64, 4
    $region9: #{tpu_custom_call.1} parent=1 // pred_fallthru
      _
    // Predicated region
    $region10: #{tpu_custom_call.1} parent=1 // pred_check
      _
    $region11: #{tpu_custom_call.1} parent=1 // pred_check_branch
      %38 = sbr.rel (0) target = $region13
    $region12: #{tpu_custom_call.1} parent=1 // pred_region
      _
    $region13: #{tpu_custom_call.1} parent=1 // pred_fallthru
      _
    // Predicated region
    $region14: #{tpu_custom_call.1} parent=1 // pred_check
      _
    $region15: #{tpu_custom_call.1} parent=1 // pred_check_branch
      %40 = sbr.rel (0) target = $region17
    $region16: #{tpu_custom_call.1} parent=1 // pred_region
      %42 = vsyncadd [#allocation6], 0
      %s43 = sshll.u32 %s3, 4
      %s44 = int_to_ptr.hbm [resolvable:$true] %s43
      %s45 = sshll.u32 [#allocation7], 4
      %s46 = int_to_ptr.vmem [resolvable:$true] %s45
      %51 = dma.hbm_to_vmem [thread:$0]  %s44, 1024, %s46, [#allocation6], 64, 64, 4
    $region17: #{tpu_custom_call.1} parent=1 // pred_fallthru
      _
    // Predicated region
    $region18: #{tpu_custom_call.1} parent=1 // pred_check
      _
    $region19: #{tpu_custom_call.1} parent=1 // pred_check_branch
      %53 = sbr.rel (0) target = $region21
    $region20: #{tpu_custom_call.1} parent=1 // pred_region
      _
    $region21: #{tpu_custom_call.1} parent=1 // pred_fallthru
      _
    // Predicated region
    $region22: #{tpu_custom_call.1} parent=1 // pred_check
      _
    $region23: #{tpu_custom_call.1} parent=1 // pred_check_branch
      %55 = sbr.rel (0) target = $region25
    $region24: #{tpu_custom_call.1} parent=1 // pred_region
      %57 = dma.done [#allocation3], 64
    $region25: #{tpu_custom_call.1} parent=1 // pred_fallthru
      _
    // Predicated region
    $region26: #{tpu_custom_call.1} parent=1 // pred_check
      _
    $region27: #{tpu_custom_call.1} parent=1 // pred_check_branch
      %59 = sbr.rel (0) target = $region29
    $region28: #{tpu_custom_call.1} parent=1 // pred_region
      %61 = dma.done [#allocation6], 1024
    $region29: #{tpu_custom_call.1} parent=1 // pred_fallthru
      _
    // Predicated region
    $region30: #{tpu_custom_call.1} parent=1 // pred_check
      _
    $region31: #{tpu_custom_call.1} parent=1 // pred_check_branch
      %63 = sbr.rel (0) target = $region33
    $region32: #{tpu_custom_call.1} parent=1 // pred_region
      %65 = dma.done [#allocation6], 1024
    $region33: #{tpu_custom_call.1} parent=1 // pred_fallthru
      _
    %v66 = vld [vmem:[%s2] sm:$0x1]
    %v67 = vld [vmem:[%s4] sm:$0x1]
    %v68 = vld [vmem:[#allocation2] sm:$0xf]
    %v69 = vld [vmem:[#allocation5] sm:$0xf]
    %v70 = vld [vmem:[#allocation5 + $0x4] sm:$0xf]
    %v71 = vld [vmem:[#allocation5 + $0x8] sm:$0xf]
    %v72 = vld [vmem:[#allocation5 + $0xc] sm:$0xf]
    %v73 = vld [vmem:[#allocation5 + $0x10] sm:$0xf]
    %v74 = vld [vmem:[#allocation5 + $0x14] sm:$0xf]
    %v75 = vld [vmem:[#allocation5 + $0x18] sm:$0xf]
    %v76 = vld [vmem:[#allocation5 + $0x1c] sm:$0xf]
    %v77 = vld [vmem:[#allocation5 + $0x20] sm:$0xf]
    %v78 = vld [vmem:[#allocation5 + $0x24] sm:$0xf]
    %v79 = vld [vmem:[#allocation5 + $0x28] sm:$0xf]
    %v80 = vld [vmem:[#allocation5 + $0x2c] sm:$0xf]
    %v81 = vld [vmem:[#allocation5 + $0x30] sm:$0xf]
    %v82 = vld [vmem:[#allocation5 + $0x34] sm:$0xf]
    %v83 = vld [vmem:[#allocation5 + $0x38] sm:$0xf]
    %v84 = vld [vmem:[#allocation5 + $0x3c] sm:$0xf]
    %v86 = vperm.slane %v66, 0
    %v104 = vunpack.c.l.b16 %v69
    %v105 = vunpack.c.l.b16 %v70
    %v106 = vunpack.c.l.b16 %v71
    %v107 = vunpack.c.l.b16 %v72
    %v108 = vunpack.c.l.b16 %v73
    %v109 = vunpack.c.l.b16 %v74
    %v110 = vunpack.c.l.b16 %v75
    %v111 = vunpack.c.l.b16 %v76
    %v112 = vunpack.c.l.b16 %v77
    %v113 = vunpack.c.l.b16 %v78
    %v114 = vunpack.c.l.b16 %v79
    %v115 = vunpack.c.l.b16 %v80
    %v116 = vunpack.c.l.b16 %v81
    %v117 = vunpack.c.l.b16 %v82
    %v118 = vunpack.c.l.b16 %v83
    %v119 = vunpack.c.l.b16 %v84
    %v120 = vpack.c.b16 %v105, %v104
    %v121 = vpack.c.b16 %v107, %v106
    %v122 = vpack.c.b16 %v109, %v108
    %v123 = vpack.c.b16 %v111, %v110
    %v124 = vpack.c.b16 %v113, %v112
    %v125 = vpack.c.b16 %v115, %v114
    %v126 = vpack.c.b16 %v117, %v116
    %v127 = vpack.c.b16 %v119, %v118
    %136 = vmatpush.bf16.xpose.msra.mxu0 %v127
    %137 = vmatpush.bf16.xpose.msra.mxu0 %v126
    %138 = vmatpush.bf16.xpose.msra.mxu0 %v125
    %139 = vmatpush.bf16.xpose.msra.mxu0 %v124
    %140 = vmatpush.bf16.xpose.msra.mxu0 %v123
    %141 = vmatpush.bf16.xpose.msra.mxu0 %v122
    %142 = vmatpush.bf16.xpose.msra.mxu0 %v121
    %143 = vmatpush.bf16.xpose.msra.mxu0 %v120
    %144 = vmatmul.bf16.gmra.mxu0 %v68
    %v145 = vpop.f32.mrf.mxu0
    %v146 = vadd.f32 %v86, %v145
    %v147 = vpop.f32.mrf.mxu0
    %148 = vdwg.mxu0
    %v149 = vxor.u32 %v146, 2147483648
    %v150 = vmul.f32 %v149, 1.442695
    %v151 = vpow.pop %v150
    %v152 = vadd.f32 %v151, 1.0
    %v153 = vrcp.pop %v152
    %v154 = vmul.f32 %v152, %v153
    %v155 = vsub.f32 1.0, %v154
    %v156 = vmul.f32 %v153, %v155
    %v157 = vadd.f32 %v153, %v156
    %vm158 = vweird.f32 %v152
    %vm159 = vweird.f32 %v153
    %vm160 = vmor %vm158, %vm159
    %v161 = vsel %vm160, %v153, %v157
    %v162 = vand.u32 2147483647, %v152
    %vm163 = vcmp.eq.f32.partialorder %v162, 8.507059e+37
    %v164 = vand.u32 %v152, 2147483648
    %v165 = vor.u32 1.1754944e-38, %v164
    %v166 = vsel %vm163, %v165, %v161
    %v167 = vmul.f32 1.0, %v166
    %v168 = vpack.c.bf16 %v167, %v167
    %v169 = vld [vmem:[#allocation7] sm:$0xf]
    %v170 = vld [vmem:[#allocation7 + $0x4] sm:$0xf]
    %v171 = vld [vmem:[#allocation7 + $0x8] sm:$0xf]
    %v172 = vld [vmem:[#allocation7 + $0xc] sm:$0xf]
    %v173 = vld [vmem:[#allocation7 + $0x10] sm:$0xf]
    %v174 = vld [vmem:[#allocation7 + $0x14] sm:$0xf]
    %v175 = vld [vmem:[#allocation7 + $0x18] sm:$0xf]
    %v176 = vld [vmem:[#allocation7 + $0x1c] sm:$0xf]
    %v177 = vld [vmem:[#allocation7 + $0x20] sm:$0xf]
    %v178 = vld [vmem:[#allocation7 + $0x24] sm:$0xf]
    %v179 = vld [vmem:[#allocation7 + $0x28] sm:$0xf]
    %v180 = vld [vmem:[#allocation7 + $0x2c] sm:$0xf]
    %v181 = vld [vmem:[#allocation7 + $0x30] sm:$0xf]
    %v182 = vld [vmem:[#allocation7 + $0x34] sm:$0xf]
    %v183 = vld [vmem:[#allocation7 + $0x38] sm:$0xf]
    %v184 = vld [vmem:[#allocation7 + $0x3c] sm:$0xf]
    %v186 = vperm.slane %v67, 0
    %v204 = vunpack.c.l.b16 %v169
    %v205 = vunpack.c.l.b16 %v170
    %v206 = vunpack.c.l.b16 %v171
    %v207 = vunpack.c.l.b16 %v172
    %v208 = vunpack.c.l.b16 %v173
    %v209 = vunpack.c.l.b16 %v174
    %v210 = vunpack.c.l.b16 %v175
    %v211 = vunpack.c.l.b16 %v176
    %v212 = vunpack.c.l.b16 %v177
    %v213 = vunpack.c.l.b16 %v178
    %v214 = vunpack.c.l.b16 %v179
    %v215 = vunpack.c.l.b16 %v180
    %v216 = vunpack.c.l.b16 %v181
    %v217 = vunpack.c.l.b16 %v182
    %v218 = vunpack.c.l.b16 %v183
    %v219 = vunpack.c.l.b16 %v184
    %v220 = vpack.c.b16 %v205, %v204
    %v221 = vpack.c.b16 %v207, %v206
    %v222 = vpack.c.b16 %v209, %v208
    %v223 = vpack.c.b16 %v211, %v210
    %v224 = vpack.c.b16 %v213, %v212
    %v225 = vpack.c.b16 %v215, %v214
    %v226 = vpack.c.b16 %v217, %v216
    %v227 = vpack.c.b16 %v219, %v218
    %236 = vmatpush.bf16.xpose.msra.mxu0 %v227
    %237 = vmatpush.bf16.xpose.msra.mxu0 %v226
    %238 = vmatpush.bf16.xpose.msra.mxu0 %v225
    %239 = vmatpush.bf16.xpose.msra.mxu0 %v224
    %240 = vmatpush.bf16.xpose.msra.mxu0 %v223
    %241 = vmatpush.bf16.xpose.msra.mxu0 %v222
    %242 = vmatpush.bf16.xpose.msra.mxu0 %v221
    %243 = vmatpush.bf16.xpose.msra.mxu0 %v220
    %244 = vmatmul.bf16.gmra.mxu0 %v168
    %v245 = vpop.f32.mrf.mxu0
    %v246 = vadd.f32 %v186, %v245
    %v247 = vpop.f32.mrf.mxu0
    %248 = vdwg.mxu0
    %v249 = vxor.u32 %v246, 2147483648
    %v250 = vmul.f32 %v249, 1.442695
    %v251 = vpow.pop %v250
    %v252 = vadd.f32 %v251, 1.0
    %v253 = vrcp.pop %v252
    %v254 = vmul.f32 %v252, %v253
    %v255 = vsub.f32 1.0, %v254
    %v256 = vmul.f32 %v253, %v255
    %v257 = vadd.f32 %v253, %v256
    %vm258 = vweird.f32 %v252
    %vm259 = vweird.f32 %v253
    %vm260 = vmor %vm258, %vm259
    %v261 = vsel %vm260, %v253, %v257
    %v262 = vand.u32 2147483647, %v252
    %vm263 = vcmp.eq.f32.partialorder %v262, 8.507059e+37
    %v264 = vand.u32 %v252, 2147483648
    %v265 = vor.u32 1.1754944e-38, %v264
    %v266 = vsel %vm263, %v265, %v261
    %v267 = vmul.f32 1.0, %v266
    %268 = vst [vmem:[#allocation8] sm:$0xff] %v267
    // Predicated region
    $region34: #{tpu_custom_call.1} parent=1 // pred_check
      _
    $region35: #{tpu_custom_call.1} parent=1 // pred_check_branch
      %270 = sbr.rel (0) target = $region37
    $region36: #{tpu_custom_call.1} parent=1 // pred_region
      %272 = vsyncadd [#allocation4], 0
      %s274 = sshll.u32 [#allocation8], 4
      %s275 = int_to_ptr.vmem [resolvable:$true] %s274
      %s276 = sshll.u32 %s5, 4
      %s277 = int_to_ptr.hbm [resolvable:$true] %s276
      %279 = dma.vmem_to_hbm [thread:$0]  %s275, 128, %s277, [#allocation4]
    $region37: #{tpu_custom_call.1} parent=1 // pred_fallthru
      _
    // Predicated region
    $region38: #{tpu_custom_call.1} parent=1 // pred_check
      _
    $region39: #{tpu_custom_call.1} parent=1 // pred_check_branch
      %281 = sbr.rel (0) target = $region41
    $region40: #{tpu_custom_call.1} parent=1 // pred_region
      %283 = dma.done [#allocation4], 128
    $region41: #{tpu_custom_call.1} parent=1 // pred_fallthru
      _
    %284 = vsyncpa [#allocation3], 1
    %285 = vsyncpa [#allocation6], 1
    %286 = vsyncpa [#allocation4], 1

</llo_original>
